<compile_context>
chip_gen: v6e
topology: v6e:2x2x1
jax: 0.10.0
libtpu: 0.0.40
codegen_flags: <defaults>
</compile_context>

<pallas_src>
import functools

import jax
import jax.numpy as jnp
from jax import lax
from jax.experimental import pallas as pl
from jax.experimental.pallas import tpu as pltpu


# ---------------------------------------------------------------------------
# In-kernel math helpers (all f32)
# ---------------------------------------------------------------------------
def _erf(x):
    # Abramowitz & Stegun 7.1.26 rational approximation, |err| <= 1.5e-7.
    a1, a2, a3, a4, a5 = (0.254829592, -0.284496736, 1.421413741,
                          -1.453152027, 1.061405429)
    p = 0.3275911
    s = jnp.sign(x)
    ax = jnp.abs(x)
    t = 1.0 / (1.0 + p * ax)
    poly = t * (a1 + t * (a2 + t * (a3 + t * (a4 + t * a5))))
    return s * (1.0 - poly * jnp.exp(-ax * ax))


def _gelu_exact(x):
    # nn.GELU() default is the exact erf-based GELU.
    return 0.5 * x * (1.0 + _erf(x * 0.7071067811865476))


def _layernorm(x, g, b, eps=1e-5):
    mu = jnp.mean(x, axis=-1, keepdims=True)
    var = jnp.mean((x - mu) ** 2, axis=-1, keepdims=True)
    return (x - mu) * lax.rsqrt(var + eps) * g + b


# ---------------------------------------------------------------------------
# Kernel 1: LayerNorm1 + Q/K/V projection.  Grid = (B, Np // tq), fully parallel.
# ---------------------------------------------------------------------------
def qkv_projection_kernel(x_ref, g1_ref, b1_ref, wq_ref, wk_ref, wv_ref,
                          q_ref, k_ref, v_ref, *, scale, mm_dtype):
    xh = _layernorm(x_ref[...].astype(jnp.float32), g1_ref[0], b1_ref[0])
    xh = xh.astype(mm_dtype)
    q = jnp.dot(xh, wq_ref[...], preferred_element_type=jnp.float32)
    # Fold the softmax scale into Q here: O(N*D) mults instead of O(N^2).
    q_ref[...] = (q * scale).astype(q_ref.dtype)
    k_ref[...] = jnp.dot(xh, wk_ref[...],
                         preferred_element_type=jnp.float32).astype(k_ref.dtype)
    v_ref[...] = jnp.dot(xh, wv_ref[...],
                         preferred_element_type=jnp.float32).astype(v_ref.dtype)


# ---------------------------------------------------------------------------
# Kernel 2: attention (query tile vs ALL keys) + proj + V-residual + LN2 + MLP.
# Grid = (B, Np // tq), fully parallel (no cross-tile scratch).
# ---------------------------------------------------------------------------
def attention_mlp_kernel(q_ref, k_ref, v_ref, vres_ref,
                         wproj_ref, bproj_ref, g2_ref, b2_ref,
                         w1_ref, bm1_ref, w2_ref, bm2_ref,
                         out_ref, *, n_real, n_padded, mm_dtype, exp_dtype):
    # Q·K^T contracting the LAST dims of both operands (no explicit K transpose).
    s = lax.dot_general(q_ref[...], k_ref[...],
                        dimension_numbers=(((1,), (1,)), ((), ())),
                        preferred_element_type=jnp.float32)        # (tq, Np) f32

    if n_padded > n_real:                       # mask padded keys (static branch)
        key_idx = lax.broadcasted_iota(jnp.int32, s.shape, 1)
        s = jnp.where(key_idx < n_real, s, -1e30)

    m = jnp.max(s, axis=-1, keepdims=True)
    # exp in exp_dtype (bf16 on v6e/v7x): the N^2 exps dominate the non-MXU
    # cost and this yields the bf16 P block for the P·V matmul directly.
    p = jnp.exp((s - m).astype(exp_dtype))                          # (tq, Np)
    # Softmax denominator accumulated in f32 (bf16 accumulation over N keys
    # would lose too much precision).
    l = jnp.sum(p.astype(jnp.float32), axis=-1, keepdims=True)      # (tq, 1)

    o = jnp.dot(p.astype(mm_dtype), v_ref[...],
                preferred_element_type=jnp.float32)                 # (tq, D)
    # Deferred softmax normalization: scale the (tq, D) P·V output instead of
    # the (tq, Np) probability block; applied before proj bias and residual.
    o = o * pl.reciprocal(l, approx=True)

    o = jnp.dot(o.astype(mm_dtype), wproj_ref[...],
                preferred_element_type=jnp.float32) + bproj_ref[0]

    x1 = vres_ref[...].astype(jnp.float32) + o   # residual vs V (num_heads == 1)

    # ---- LN2 + MLP(GELU) + residual ----
    x2 = _layernorm(x1, g2_ref[0], b2_ref[0])
    h = _gelu_exact(jnp.dot(x2.astype(mm_dtype), w1_ref[...],
                            preferred_element_type=jnp.float32) + bm1_ref[0])
    mlp = jnp.dot(h.astype(mm_dtype), w2_ref[...],
                  preferred_element_type=jnp.float32) + bm2_ref[0]

    out_ref[...] = (x1 + mlp).astype(out_ref.dtype)


# ---------------------------------------------------------------------------
# Wrapper
# ---------------------------------------------------------------------------
def _round_up(a, m):
    return (a + m - 1) // m * m


def token_transformer(x, params, *, num_heads=1, max_q_tile=256,
                      matmul_dtype=jnp.bfloat16, exp_dtype=jnp.bfloat16):
    """exp_dtype: keep bf16 on v6e/v7x; pass jnp.float32 on v5e (no bf16 EUP)."""
    assert num_heads == 1, "Token_transformer's Attention only supports num_heads=1"
    B, N, C = x.shape
    D = params["w_proj"].shape[0]          # in_dim
    H = params["w_fc1"].shape[1]           # mlp hidden
    scale = float((C // num_heads) ** (-0.5))   # qk_scale=None -> head_dim**-0.5

    # Query/token tile: multiples of 256 fill the MXU M dim on v6e/v7x and fit
    # v7x's 64 MiB VMEM; for small N a single sublane-aligned tile.  N is
    # padded up to a multiple of the tile (padded keys masked in the softmax)
    # instead of ever degenerating to one huge (N, N) score block.
    tq = _round_up(N, 8) if N <= max_q_tile else max_q_tile
    n_tiles = (N + tq - 1) // tq
    Np = n_tiles * tq
    x_in = x if Np == N else jnp.pad(x, ((0, 0), (0, Np - N), (0, 0)))

    mmd = matmul_dtype
    # Pure-matmul-operand weights travel in bf16 (full MXU rate, half the
    # VMEM/DMA); biases and LayerNorm params stay f32.
    wq = params["w_q"].astype(mmd)
    wk = params["w_k"].astype(mmd)
    wv = params["w_v"].astype(mmd)
    wproj = params["w_proj"].astype(mmd)
    wfc1 = params["w_fc1"].astype(mmd)
    wfc2 = params["w_fc2"].astype(mmd)

    cparams = pltpu.CompilerParams(
        dimension_semantics=("parallel", "parallel"),
        vmem_limit_bytes=48 * 1024 * 1024,
    )

    def res2d(shape):
        # Constant index map -> block stays resident in VMEM across grid steps.
        return pl.BlockSpec(shape, lambda b, t: (0, 0))

    # ---- kernel 1: LN1 + QKV projection (hoisted out of attention so the
    # attention grid is query-parallel: both v7x TensorCores busy at any B) ---
    q, k, v = pl.pallas_call(
        functools.partial(qkv_projection_kernel, scale=scale, mm_dtype=mmd),
        out_shape=(jax.ShapeDtypeStruct((B, Np, D), mmd),) * 3,
        grid=(B, n_tiles),
        in_specs=[
            pl.BlockSpec((None, tq, C), lambda b, t: (b, t, 0)),   # x tile
            res2d((1, C)), res2d((1, C)),                          # LN1
            res2d((C, D)), res2d((C, D)), res2d((C, D)),           # w_q/w_k/w_v
        ],
        out_specs=[pl.BlockSpec((None, tq, D), lambda b, t: (b, t, 0))] * 3,
        compiler_params=cparams,
    )(x_in, params["g1"], params["b1"], wq, wk, wv)

    # ---- kernel 2: attention + proj + residual + LN2 + MLP ------------------
    out = pl.pallas_call(
        functools.partial(attention_mlp_kernel, n_real=N, n_padded=Np,
                          mm_dtype=mmd, exp_dtype=exp_dtype),
        out_shape=jax.ShapeDtypeStruct((B, Np, D), x.dtype),
        grid=(B, n_tiles),
        in_specs=[
            pl.BlockSpec((None, tq, D), lambda b, t: (b, t, 0)),   # Q tile (scaled)
            pl.BlockSpec((None, Np, D), lambda b, t: (b, 0, 0)),   # K resident
            pl.BlockSpec((None, Np, D), lambda b, t: (b, 0, 0)),   # V resident
            pl.BlockSpec((None, tq, D), lambda b, t: (b, t, 0)),   # V residual tile
            res2d((D, D)), res2d((1, D)),                          # proj
            res2d((1, D)), res2d((1, D)),                          # LN2
            res2d((D, H)), res2d((1, H)),                          # fc1
            res2d((H, D)), res2d((1, D)),                          # fc2
        ],
        out_specs=pl.BlockSpec((None, tq, D), lambda b, t: (b, t, 0)),
        compiler_params=cparams,
    )(
        q, k, v, v,
        wproj, params["b_proj"],
        params["g2"], params["b2"],
        wfc1, params["b_fc1"],
        wfc2, params["b_fc2"],
    )

    return out if Np == N else out[:, :N, :]


# ---------------------------------------------------------------------------
# Deterministic parameter construction (mirrors the module __init__ shapes)
# ---------------------------------------------------------------------------
def init_params(key, dim, in_dim, mlp_ratio=1.0):
    hidden = int(in_dim * mlp_ratio)
    ks = jax.random.split(key, 8)
    std = 0.02
    return {
        "g1": jnp.ones((1, dim), jnp.float32),
        "b1": jnp.zeros((1, dim), jnp.float32),
        # qkv: Linear(dim, 3*in_dim, bias=False), stored transposed and split.
        "w_q": std * jax.random.normal(ks[0], (dim, in_dim), jnp.float32),
        "w_k": std * jax.random.normal(ks[1], (dim, in_dim), jnp.float32),
        "w_v": std * jax.random.normal(ks[2], (dim, in_dim), jnp.float32),
        "w_proj": std * jax.random.normal(ks[3], (in_dim, in_dim), jnp.float32),
        "b_proj": std * jax.random.normal(ks[4], (1, in_dim), jnp.float32),
        "g2": jnp.ones((1, in_dim), jnp.float32),
        "b2": jnp.zeros((1, in_dim), jnp.float32),
        "w_fc1": std * jax.random.normal(ks[5], (in_dim, hidden), jnp.float32),
        "b_fc1": std * jax.random.normal(ks[6], (1, hidden), jnp.float32),
        "w_fc2": std * jax.random.normal(ks[7], (hidden, in_dim), jnp.float32),
        "b_fc2": jnp.zeros((1, in_dim), jnp.float32),
    }


# ---------------------------------------------------------------------------
# Pure-JAX reference (f32)
# ---------------------------------------------------------------------------
def reference(x, params, *, num_heads=1):
    B, N, C = x.shape
    scale = (C // num_heads) ** (-0.5)

    def ln(v, g, b, eps=1e-5):
        mu = jnp.mean(v, -1, keepdims=True)
        var = jnp.mean((v - mu) ** 2, -1, keepdims=True)
        return (v - mu) / jnp.sqrt(var + eps) * g + b

    xh = ln(x, params["g1"][0], params["b1"][0])
    q = xh @ params["w_q"]
    k = xh @ params["w_k"]
    v = xh @ params["w_v"]
    attn = jax.nn.softmax(jnp.einsum("bnd,bmd->bnm", q, k) * scale, axis=-1)
    o = jnp.einsum("bnm,bmd->bnd", attn, v)
    o = o @ params["w_proj"] + params["b_proj"][0]
    x1 = v + o
    x2 = ln(x1, params["g2"][0], params["b2"][0])
    h = jax.nn.gelu(x2 @ params["w_fc1"] + params["b_fc1"][0], approximate=False)
    m = h @ params["w_fc2"] + params["b_fc2"][0]
    return x1 + m


if __name__ == "__main__":
    # Small shapes consistent with the module: dim=32, in_dim=64, num_heads=1,
    # mlp_ratio=1.0, B=2, N=8.
    B, N, dim, in_dim = 2, 8, 32, 64
    key = jax.random.PRNGKey(0)
    kx, kp = jax.random.split(key)
    x = jax.random.normal(kx, (B, N, dim), jnp.float32)
    params = init_params(kp, dim, in_dim, mlp_ratio=1.0)

    out = token_transformer(x, params, num_heads=1)
    out = jax.block_until_ready(out)

    ref = jax.block_until_ready(reference(x, params, num_heads=1))
    assert out.shape == (B, N, in_dim)
    # bf16 matmul operands + bf16 exp + approx reciprocal -> slightly looser
    # tolerance than a pure-f32 comparison.
    assert jnp.allclose(out, ref, atol=2e-2, rtol=2e-2), \
        f"max err {jnp.max(jnp.abs(out - ref))}"

    print("KERNEL_OK")
</pallas_src>

<mosaic_0001>
module attributes {stable_mosaic.version = 11 : i64} {
  func.func @qkv_projection_kernel(%arg0: i32, %arg1: i32, %arg2: memref<1x8x32xf32, #tpu.memory_space<vmem>>, %arg3: memref<1x32xf32, #tpu.memory_space<vmem>>, %arg4: memref<1x32xf32, #tpu.memory_space<vmem>>, %arg5: memref<32x64xbf16, #tpu.memory_space<vmem>>, %arg6: memref<32x64xbf16, #tpu.memory_space<vmem>>, %arg7: memref<32x64xbf16, #tpu.memory_space<vmem>>, %arg8: memref<1x8x64xbf16, #tpu.memory_space<vmem>>, %arg9: memref<1x8x64xbf16, #tpu.memory_space<vmem>>, %arg10: memref<1x8x64xbf16, #tpu.memory_space<vmem>>) attributes {dimension_semantics = [#tpu.dimension_semantics<parallel>, #tpu.dimension_semantics<parallel>], iteration_bounds = array<i64: 2, 1>, scalar_prefetch = 0 : i64, scratch_operands = 0 : i64, tpu.core_type = #tpu.core_type<tc>, window_params = [{transform_indices = @transform_0, window_bounds = array<i64: 1, 8, 32>}, {pipeline_mode = #tpu.pipeline_mode<synchronous>, transform_indices = @transform_1, window_bounds = array<i64: 1, 32>}, {pipeline_mode = #tpu.pipeline_mode<synchronous>, transform_indices = @transform_2, window_bounds = array<i64: 1, 32>}, {pipeline_mode = #tpu.pipeline_mode<synchronous>, transform_indices = @transform_3, window_bounds = array<i64: 32, 64>}, {pipeline_mode = #tpu.pipeline_mode<synchronous>, transform_indices = @transform_4, window_bounds = array<i64: 32, 64>}, {pipeline_mode = #tpu.pipeline_mode<synchronous>, transform_indices = @transform_5, window_bounds = array<i64: 32, 64>}, {transform_indices = @transform_6, window_bounds = array<i64: 1, 8, 64>}, {transform_indices = @transform_7, window_bounds = array<i64: 1, 8, 64>}, {transform_indices = @transform_8, window_bounds = array<i64: 1, 8, 64>}]} {
    %c0 = arith.constant 0 : index
    %c0_0 = arith.constant 0 : index
    %c0_1 = arith.constant 0 : index
    %0 = vector.load %arg2[%c0, %c0_0, %c0_1] : memref<1x8x32xf32, #tpu.memory_space<vmem>>, vector<1x8x32xf32>
    %1 = vector.shape_cast %0 : vector<1x8x32xf32> to vector<8x32xf32>
    %c0_2 = arith.constant 0 : index
    %c0_3 = arith.constant 0 : index
    %2 = vector.load %arg3[%c0_2, %c0_3] : memref<1x32xf32, #tpu.memory_space<vmem>>, vector<1x32xf32>
    %3 = vector.shape_cast %2 : vector<1x32xf32> to vector<32xf32>
    %c0_4 = arith.constant 0 : index
    %c0_5 = arith.constant 0 : index
    %4 = vector.load %arg4[%c0_4, %c0_5] : memref<1x32xf32, #tpu.memory_space<vmem>>, vector<1x32xf32>
    %5 = vector.shape_cast %4 : vector<1x32xf32> to vector<32xf32>
    %cst = arith.constant dense<0.000000e+00> : vector<8xf32>
    %6 = vector.multi_reduction <add>, %1, %cst [1] : vector<8x32xf32> to vector<8xf32>
    %7 = vector.shape_cast %6 : vector<8xf32> to vector<8x1xf32>
    %cst_6 = arith.constant 3.200000e+01 : f32
    %8 = vector.broadcast %cst_6 : f32 to vector<8x1xf32>
    %9 = arith.divf %7, %8 : vector<8x1xf32>
    %10 = vector.broadcast %9 : vector<8x1xf32> to vector<8x32xf32>
    %11 = arith.subf %1, %10 : vector<8x32xf32>
    %12 = arith.mulf %11, %11 : vector<8x32xf32>
    %cst_7 = arith.constant dense<0.000000e+00> : vector<8xf32>
    %13 = vector.multi_reduction <add>, %12, %cst_7 [1] : vector<8x32xf32> to vector<8xf32>
    %14 = vector.shape_cast %13 : vector<8xf32> to vector<8x1xf32>
    %cst_8 = arith.constant 3.200000e+01 : f32
    %15 = vector.broadcast %cst_8 : f32 to vector<8x1xf32>
    %16 = arith.divf %14, %15 : vector<8x1xf32>
    %17 = vector.broadcast %9 : vector<8x1xf32> to vector<8x32xf32>
    %18 = arith.subf %1, %17 : vector<8x32xf32>
    %cst_9 = arith.constant 9.99999974E-6 : f32
    %19 = vector.broadcast %cst_9 : f32 to vector<8x1xf32>
    %20 = arith.addf %16, %19 : vector<8x1xf32>
    %21 = math.rsqrt %20 : vector<8x1xf32>
    %22 = vector.broadcast %21 : vector<8x1xf32> to vector<8x32xf32>
    %23 = arith.mulf %18, %22 : vector<8x32xf32>
    %24 = vector.shape_cast %3 : vector<32xf32> to vector<1x32xf32>
    %25 = vector.broadcast %24 : vector<1x32xf32> to vector<8x32xf32>
    %26 = arith.mulf %23, %25 : vector<8x32xf32>
    %27 = vector.shape_cast %5 : vector<32xf32> to vector<1x32xf32>
    %28 = vector.broadcast %27 : vector<1x32xf32> to vector<8x32xf32>
    %29 = arith.addf %26, %28 : vector<8x32xf32>
    %30 = arith.truncf %29 : vector<8x32xf32> to vector<8x32xbf16>
    %c0_10 = arith.constant 0 : index
    %c0_11 = arith.constant 0 : index
    %31 = vector.load %arg5[%c0_10, %c0_11] : memref<32x64xbf16, #tpu.memory_space<vmem>>, vector<32x64xbf16>
    %cst_12 = arith.constant dense<0.000000e+00> : vector<8x64xf32>
    %32 = tpu.matmul %30, %31, %cst_12 {dimension_numbers = #tpu.dot_dimension_numbers<[1], [0], [0], [1], [0, 0, 1, 1], [], []>} : vector<8x32xbf16>, vector<32x64xbf16>, vector<8x64xf32> -> vector<8x64xf32>
    %cst_13 = arith.constant 0.176776692 : f32
    %33 = vector.broadcast %cst_13 : f32 to vector<8x64xf32>
    %34 = arith.mulf %32, %33 : vector<8x64xf32>
    %35 = arith.truncf %34 : vector<8x64xf32> to vector<8x64xbf16>
    %c0_14 = arith.constant 0 : index
    %c0_15 = arith.constant 0 : index
    %c0_16 = arith.constant 0 : index
    %36 = vector.load %arg8[%c0_14, %c0_15, %c0_16] : memref<1x8x64xbf16, #tpu.memory_space<vmem>>, vector<1x8x64xbf16>
    %37 = vector.shape_cast %36 : vector<1x8x64xbf16> to vector<8x64xbf16>
    %38 = vector.shape_cast %35 : vector<8x64xbf16> to vector<1x8x64xbf16>
    tpu.vector_store %arg8[%c0_14, %c0_15, %c0_16], %38 {strides = array<i32>} : memref<1x8x64xbf16, #tpu.memory_space<vmem>>, vector<1x8x64xbf16>,
    %c0_17 = arith.constant 0 : index
    %c0_18 = arith.constant 0 : index
    %39 = vector.load %arg6[%c0_17, %c0_18] : memref<32x64xbf16, #tpu.memory_space<vmem>>, vector<32x64xbf16>
    %cst_19 = arith.constant dense<0.000000e+00> : vector<8x64xf32>
    %40 = tpu.matmul %30, %39, %cst_19 {dimension_numbers = #tpu.dot_dimension_numbers<[1], [0], [0], [1], [0, 0, 1, 1], [], []>} : vector<8x32xbf16>, vector<32x64xbf16>, vector<8x64xf32> -> vector<8x64xf32>
    %41 = arith.truncf %40 : vector<8x64xf32> to vector<8x64xbf16>
    %c0_20 = arith.constant 0 : index
    %c0_21 = arith.constant 0 : index
    %c0_22 = arith.constant 0 : index
    %42 = vector.load %arg9[%c0_20, %c0_21, %c0_22] : memref<1x8x64xbf16, #tpu.memory_space<vmem>>, vector<1x8x64xbf16>
    %43 = vector.shape_cast %42 : vector<1x8x64xbf16> to vector<8x64xbf16>
    %44 = vector.shape_cast %41 : vector<8x64xbf16> to vector<1x8x64xbf16>
    tpu.vector_store %arg9[%c0_20, %c0_21, %c0_22], %44 {strides = array<i32>} : memref<1x8x64xbf16, #tpu.memory_space<vmem>>, vector<1x8x64xbf16>,
    %c0_23 = arith.constant 0 : index
    %c0_24 = arith.constant 0 : index
    %45 = vector.load %arg7[%c0_23, %c0_24] : memref<32x64xbf16, #tpu.memory_space<vmem>>, vector<32x64xbf16>
    %cst_25 = arith.constant dense<0.000000e+00> : vector<8x64xf32>
    %46 = tpu.matmul %30, %45, %cst_25 {dimension_numbers = #tpu.dot_dimension_numbers<[1], [0], [0], [1], [0, 0, 1, 1], [], []>} : vector<8x32xbf16>, vector<32x64xbf16>, vector<8x64xf32> -> vector<8x64xf32>
    %47 = arith.truncf %46 : vector<8x64xf32> to vector<8x64xbf16>
    %c0_26 = arith.constant 0 : index
    %c0_27 = arith.constant 0 : index
    %c0_28 = arith.constant 0 : index
    %48 = vector.load %arg10[%c0_26, %c0_27, %c0_28] : memref<1x8x64xbf16, #tpu.memory_space<vmem>>, vector<1x8x64xbf16>
    %49 = vector.shape_cast %48 : vector<1x8x64xbf16> to vector<8x64xbf16>
    %50 = vector.shape_cast %47 : vector<8x64xbf16> to vector<1x8x64xbf16>
    tpu.vector_store %arg10[%c0_26, %c0_27, %c0_28], %50 {strides = array<i32>} : memref<1x8x64xbf16, #tpu.memory_space<vmem>>, vector<1x8x64xbf16>,
    return
  }
  func.func @transform_0(%arg0: i32, %arg1: i32) -> (i32, i32, i32) {
    %c0_i32 = arith.constant 0 : i32
    %c0_i32_0 = arith.constant 0 : i32
    return %arg0, %arg1, %c0_i32 : i32, i32, i32
  }
  func.func @transform_1(%arg0: i32, %arg1: i32) -> (i32, i32) {
    %c0_i32 = arith.constant 0 : i32
    %c0_i32_0 = arith.constant 0 : i32
    %c0_i32_1 = arith.constant 0 : i32
    return %c0_i32, %c0_i32_0 : i32, i32
  }
  func.func @transform_2(%arg0: i32, %arg1: i32) -> (i32, i32) {
    %c0_i32 = arith.constant 0 : i32
    %c0_i32_0 = arith.constant 0 : i32
    %c0_i32_1 = arith.constant 0 : i32
    return %c0_i32, %c0_i32_0 : i32, i32
  }
  func.func @transform_3(%arg0: i32, %arg1: i32) -> (i32, i32) {
    %c0_i32 = arith.constant 0 : i32
    %c0_i32_0 = arith.constant 0 : i32
    %c0_i32_1 = arith.constant 0 : i32
    return %c0_i32, %c0_i32_0 : i32, i32
  }
  func.func @transform_4(%arg0: i32, %arg1: i32) -> (i32, i32) {
    %c0_i32 = arith.constant 0 : i32
    %c0_i32_0 = arith.constant 0 : i32
    %c0_i32_1 = arith.constant 0 : i32
    return %c0_i32, %c0_i32_0 : i32, i32
  }
  func.func @transform_5(%arg0: i32, %arg1: i32) -> (i32, i32) {
    %c0_i32 = arith.constant 0 : i32
    %c0_i32_0 = arith.constant 0 : i32
    %c0_i32_1 = arith.constant 0 : i32
    return %c0_i32, %c0_i32_0 : i32, i32
  }
  func.func @transform_6(%arg0: i32, %arg1: i32) -> (i32, i32, i32) {
    %c0_i32 = arith.constant 0 : i32
    %c0_i32_0 = arith.constant 0 : i32
    return %arg0, %arg1, %c0_i32 : i32, i32, i32
  }
  func.func @transform_7(%arg0: i32, %arg1: i32) -> (i32, i32, i32) {
    %c0_i32 = arith.constant 0 : i32
    %c0_i32_0 = arith.constant 0 : i32
    return %arg0, %arg1, %c0_i32 : i32, i32, i32
  }
  func.func @transform_8(%arg0: i32, %arg1: i32) -> (i32, i32, i32) {
    %c0_i32 = arith.constant 0 : i32
    %c0_i32_0 = arith.constant 0 : i32
    return %arg0, %arg1, %c0_i32 : i32, i32, i32
  }
}

</mosaic_0001>

<llo_original>
// kernel: tpu_custom_call.1
$region0: #{tpu_custom_call.1}
  #allocation0 [shape = 'u32[]', space=smem, size = 0x4, offset = 0x4, fixed_abs, tag = 'smem constant byte address 0x4 - core index']
  #allocation1 [shape = 'u32[144,128]{1,0:T(1,128)}', space=vmem, size = 0x12000, scoped, tag = 'internal scratch']
  %s0 = inlined_call_operand.hbm [shape: f32[2,8,32], index: 0, kind: input, shape index: {}]
  %s1 = inlined_call_operand.vmem [shape: f32[1,32], index: 1, kind: input, shape index: {}]
  %s2 = inlined_call_operand.vmem [shape: f32[1,32], index: 2, kind: input, shape index: {}]
  %s3 = inlined_call_operand.hbm [shape: bf16[32,64], index: 3, kind: input, shape index: {}]
  %s4 = inlined_call_operand.hbm [shape: bf16[32,64], index: 4, kind: input, shape index: {}]
  %s5 = inlined_call_operand.hbm [shape: bf16[32,64], index: 5, kind: input, shape index: {}]
  %s6 = inlined_call_operand.hbm [shape: bf16[2,8,64], index: 6, kind: output, shape index: {0}]
  %s7 = inlined_call_operand.hbm [shape: bf16[2,8,64], index: 7, kind: output, shape index: {1}]
  %s8 = inlined_call_operand.hbm [shape: bf16[2,8,64], index: 8, kind: output, shape index: {2}]
  %9 = xla_tuple %s6, %s7, %s8
  %s10 = sld [smem:[#allocation0]]
  $region89: #{tpu_custom_call.1} parent=0
    _
  %s12 = ssub.s32 1, %s10
  %s13 = scalar_select 0, %s12, %s10
  $region1: #{tpu_custom_call.1} parent=0
    #allocation2 [shape = 'u8[8192]{0}', space=vmem, size = 0x2000, scoped, tag = 'input window, operand 0']
    #allocation3 [shape = 's32[2]{0}', space=sflag, size = 0x8, scoped, tag = 'scoped memory for tpu_custom_call.1']
    #allocation4 [shape = 's32[2]{0}', space=sflag, size = 0x8, scoped, tag = 'scoped memory for tpu_custom_call.1']
    #allocation5 [shape = 'u8[8192]{0}', space=vmem, size = 0x2000, scoped, tag = 'input window, operand 3, single buffered']
    #allocation6 [shape = 's32[1]{0}', space=sflag, size = 0x4, scoped, tag = 'scoped memory for tpu_custom_call.1']
    #allocation7 [shape = 'u8[8192]{0}', space=vmem, size = 0x2000, scoped, tag = 'input window, operand 4, single buffered']
    #allocation8 [shape = 'u8[8192]{0}', space=vmem, size = 0x2000, scoped, tag = 'input window, operand 5, single buffered']
    #allocation9 [shape = 's32[1]{0}', space=sflag, size = 0x4, scoped, tag = 'scoped memory for tpu_custom_call.1']
    #allocation10 [shape = 'u8[4096]{0}', space=vmem, size = 0x1000, scoped, tag = 'output window, operand 0']
    #allocation11 [shape = 'u8[4096]{0}', space=vmem, size = 0x1000, scoped, tag = 'output window, operand 1']
    #allocation12 [shape = 's32[2]{0}', space=sflag, size = 0x8, scoped, tag = 'scoped memory for tpu_custom_call.1']
    #allocation13 [shape = 'u8[4096]{0}', space=vmem, size = 0x1000, scoped, tag = 'output window, operand 2']
    %14 = vsyncpa [#allocation3], 0
    %s15 = scalar_lea.sflag [#allocation3], 1
    %16 = vsyncpa %s15, 0
    %17 = vsyncpa [#allocation6], 0
    %18 = vsyncpa [#allocation9], 0
    %19 = vsyncpa [#allocation4], 0
    %s20 = scalar_lea.sflag [#allocation4], 1
    %21 = vsyncpa %s20, 0
    %22 = vsyncpa [#allocation12], 0
    %s23 = scalar_lea.sflag [#allocation12], 1
    %24 = vsyncpa %s23, 0
    loop: start=0, step=1, limit=4
    $region2: #{tpu_custom_call.1} parent=1 // loop_pre_header
      _
    $region3: #{tpu_custom_call.1} parent=1 // loop_header
      %s26 = sphi 0, %s30
      %p27 = scmp.ge.s32.totalorder %s26, 4
      %s33 = sphi 0, %s45
      %s34 = sphi 0, %s41
      %s35 = sphi 0, %s33
      %s36 = sphi 0, %s34
      %s37 = sphi 0, %s35
      %s38 = sphi 0, %s36
      %s50 = sphi 0, %s52
      %s53 = sphi 0, %s50
      %s54 = sphi 0, %s53
      %s70 = sphi 0, %s54
      %s74 = sphi 0, %s74
      %s76 = sphi 0, %s74
      %s77 = sphi 0, %s76
      %s91 = sphi 0, %s77
      %s95 = sphi 0, %s95
      %s97 = sphi 0, %s95
      %s98 = sphi 0, %s97
      %s112 = sphi 0, %s98
      %s116 = sphi 0, %s116
      %s118 = sphi 0, %s116
      %s119 = sphi 0, %s118
      %s133 = sphi 0, %s119
      %s137 = sphi 0, %s137
      %s139 = sphi 0, %s137
      %s140 = sphi 0, %s139
      %s154 = sphi 0, %s140
      %s158 = sphi 0, %s158
      %s160 = sphi 0, %s158
      %s161 = sphi 0, %s160
      %s175 = sphi 0, %s161
      %s183 = sphi 0, %s185
      %s186 = sphi 0, %s183
      %s187 = sphi 0, %s186
      %s203 = sphi 0, %s187
      %s211 = sphi 0, %s213
      %s214 = sphi 0, %s211
      %s215 = sphi 0, %s214
      %s231 = sphi 0, %s215
      %s239 = sphi 0, %s241
      %s242 = sphi 0, %s239
      %s243 = sphi 0, %s242
      %s259 = sphi 0, %s243
    $region4: #{tpu_custom_call.1} parent=1 // loop_header_branch
      %29 = sbr.rel (%p27) target = $region8
    $region5: #{tpu_custom_call.1} parent=1 // loop_body
      %s31 = ssub.s32 %s26, 1
      %s32 = ssub.s32 %s26, 2
      %s39 = sadd.s32 1, %s34
      %p40 = scmp.ge.s32.totalorder %s39, 1
      %s41 = scalar_select %p40, 0, %s39
      %s42 = sadd.s32 1, %s33
      %s43 = scalar_select %p40, %s42, %s33
      %p44 = scmp.ge.s32.totalorder %s43, 2
      %s45 = scalar_select %p44, 0, %s43
      %s46 = ssub.s32 %s33, %s45
      %s47 = ssub.s32 %s34, %s41
      %s48 = sor.u32 %s46, %s47
      %p49 = scmp.eq.s32.totalorder %s48, 0
      %s51 = sadd.s32 %s50, 1
      %s52 = scalar_select %p49, %s50, %s51
      %p55 = pneg %p49
      %p56 = scmp.eq.s32.totalorder %s26, 1
      %p57 = por %p55, %p56
      %p58 = scmp.ne.s32.totalorder %s50, %s53
      %p59 = scmp.eq.s32.totalorder %s26, 0
      %p60 = por %p58, %p59
      %p61 = scmp.ne.s32.totalorder %s50, %s53
      %p62 = scmp.eq.s32.totalorder %s31, 1
      %p63 = por %p61, %p62
      %p64 = scmp.ne.s32.totalorder %s53, %s54
      %p65 = scmp.eq.s32.totalorder %s31, 0
      %p66 = por %p64, %p65
      %p67 = scmp.ne.s32.totalorder %s53, %s54
      %p68 = scmp.eq.s32.totalorder %s32, 1
      %p69 = por %p67, %p68
      %p71 = scmp.ne.s32.totalorder %s54, %s70
      %p72 = scmp.eq.s32.totalorder %s32, 0
      %p73 = por %p71, %p72
      %s75 = sadd.s32 %s74, 1
      %p78 = scmp.eq.s32.totalorder %s26, 1
      %p79 = scmp.ne.s32.totalorder %s74, %s76
      %p80 = scmp.eq.s32.totalorder %s26, 0
      %p81 = por %p79, %p80
      %p82 = scmp.ne.s32.totalorder %s74, %s76
      %p83 = scmp.eq.s32.totalorder %s31, 1
      %p84 = por %p82, %p83
      %p85 = scmp.ne.s32.totalorder %s76, %s77
      %p86 = scmp.eq.s32.totalorder %s31, 0
      %p87 = por %p85, %p86
      %p88 = scmp.ne.s32.totalorder %s76, %s77
      %p89 = scmp.eq.s32.totalorder %s32, 1
      %p90 = por %p88, %p89
      %p92 = scmp.ne.s32.totalorder %s77, %s91
      %p93 = scmp.eq.s32.totalorder %s32, 0
      %p94 = por %p92, %p93
      %s96 = sadd.s32 %s95, 1
      %p99 = scmp.eq.s32.totalorder %s26, 1
      %p100 = scmp.ne.s32.totalorder %s95, %s97
      %p101 = scmp.eq.s32.totalorder %s26, 0
      %p102 = por %p100, %p101
      %p103 = scmp.ne.s32.totalorder %s95, %s97
      %p104 = scmp.eq.s32.totalorder %s31, 1
      %p105 = por %p103, %p104
      %p106 = scmp.ne.s32.totalorder %s97, %s98
      %p107 = scmp.eq.s32.totalorder %s31, 0
      %p108 = por %p106, %p107
      %p109 = scmp.ne.s32.totalorder %s97, %s98
      %p110 = scmp.eq.s32.totalorder %s32, 1
      %p111 = por %p109, %p110
      %p113 = scmp.ne.s32.totalorder %s98, %s112
      %p114 = scmp.eq.s32.totalorder %s32, 0
      %p115 = por %p113, %p114
      %s117 = sadd.s32 %s116, 1
      %p120 = scmp.eq.s32.totalorder %s26, 1
      %p121 = scmp.ne.s32.totalorder %s116, %s118
      %p122 = scmp.eq.s32.totalorder %s26, 0
      %p123 = por %p121, %p122
      %p124 = scmp.ne.s32.totalorder %s116, %s118
      %p125 = scmp.eq.s32.totalorder %s31, 1
      %p126 = por %p124, %p125
      %p127 = scmp.ne.s32.totalorder %s118, %s119
      %p128 = scmp.eq.s32.totalorder %s31, 0
      %p129 = por %p127, %p128
      %p130 = scmp.ne.s32.totalorder %s118, %s119
      %p131 = scmp.eq.s32.totalorder %s32, 1
      %p132 = por %p130, %p131
      %p134 = scmp.ne.s32.totalorder %s119, %s133
      %p135 = scmp.eq.s32.totalorder %s32, 0
      %p136 = por %p134, %p135
      %s138 = sadd.s32 %s137, 1
      %p141 = scmp.eq.s32.totalorder %s26, 1
      %p142 = scmp.ne.s32.totalorder %s137, %s139
      %p143 = scmp.eq.s32.totalorder %s26, 0
      %p144 = por %p142, %p143
      %p145 = scmp.ne.s32.totalorder %s137, %s139
      %p146 = scmp.eq.s32.totalorder %s31, 1
      %p147 = por %p145, %p146
      %p148 = scmp.ne.s32.totalorder %s139, %s140
      %p149 = scmp.eq.s32.totalorder %s31, 0
      %p150 = por %p148, %p149
      %p151 = scmp.ne.s32.totalorder %s139, %s140
      %p152 = scmp.eq.s32.totalorder %s32, 1
      %p153 = por %p151, %p152
      %p155 = scmp.ne.s32.totalorder %s140, %s154
      %p156 = scmp.eq.s32.totalorder %s32, 0
      %p157 = por %p155, %p156
      %s159 = sadd.s32 %s158, 1
      %p162 = scmp.eq.s32.totalorder %s26, 1
      %p163 = scmp.ne.s32.totalorder %s158, %s160
      %p164 = scmp.eq.s32.totalorder %s26, 0
      %p165 = por %p163, %p164
      %p166 = scmp.ne.s32.totalorder %s158, %s160
      %p167 = scmp.eq.s32.totalorder %s31, 1
      %p168 = por %p166, %p167
      %p169 = scmp.ne.s32.totalorder %s160, %s161
      %p170 = scmp.eq.s32.totalorder %s31, 0
      %p171 = por %p169, %p170
      %p172 = scmp.ne.s32.totalorder %s160, %s161
      %p173 = scmp.eq.s32.totalorder %s32, 1
      %p174 = por %p172, %p173
      %p176 = scmp.ne.s32.totalorder %s161, %s175
      %p177 = scmp.eq.s32.totalorder %s32, 0
      %p178 = por %p176, %p177
      %s179 = ssub.s32 %s33, %s45
      %s180 = ssub.s32 %s34, %s41
      %s181 = sor.u32 %s179, %s180
      %p182 = scmp.eq.s32.totalorder %s181, 0
      %s184 = sadd.s32 %s183, 1
      %s185 = scalar_select %p182, %s183, %s184
      %p188 = pneg %p182
      %p189 = scmp.eq.s32.totalorder %s26, 1
      %p190 = por %p188, %p189
      %p191 = scmp.ne.s32.totalorder %s183, %s186
      %p192 = scmp.eq.s32.totalorder %s26, 0
      %p193 = por %p191, %p192
      %p194 = scmp.ne.s32.totalorder %s183, %s186
      %p195 = scmp.eq.s32.totalorder %s31, 1
      %p196 = por %p194, %p195
      %p197 = scmp.ne.s32.totalorder %s186, %s187
      %p198 = scmp.eq.s32.totalorder %s31, 0
      %p199 = por %p197, %p198
      %p200 = scmp.ne.s32.totalorder %s186, %s187
      %p201 = scmp.eq.s32.totalorder %s32, 1
      %p202 = por %p200, %p201
      %p204 = scmp.ne.s32.totalorder %s187, %s203
      %p205 = scmp.eq.s32.totalorder %s32, 0
      %p206 = por %p204, %p205
      %s207 = ssub.s32 %s33, %s45
      %s208 = ssub.s32 %s34, %s41
      %s209 = sor.u32 %s207, %s208
      %p210 = scmp.eq.s32.totalorder %s209, 0
      %s212 = sadd.s32 %s211, 1
      %s213 = scalar_select %p210, %s211, %s212
      %p216 = pneg %p210
      %p217 = scmp.eq.s32.totalorder %s26, 1
      %p218 = por %p216, %p217
      %p219 = scmp.ne.s32.totalorder %s211, %s214
      %p220 = scmp.eq.s32.totalorder %s26, 0
      %p221 = por %p219, %p220
      %p222 = scmp.ne.s32.totalorder %s211, %s214
      %p223 = scmp.eq.s32.totalorder %s31, 1
      %p224 = por %p222, %p223
      %p225 = scmp.ne.s32.totalorder %s214, %s215
      %p226 = scmp.eq.s32.totalorder %s31, 0
      %p227 = por %p225, %p226
      %p228 = scmp.ne.s32.totalorder %s214, %s215
      %p229 = scmp.eq.s32.totalorder %s32, 1
      %p230 = por %p228, %p229
      %p232 = scmp.ne.s32.totalorder %s215, %s231
      %p233 = scmp.eq.s32.totalorder %s32, 0
      %p234 = por %p232, %p233
      %s235 = ssub.s32 %s33, %s45
      %s236 = ssub.s32 %s34, %s41
      %s237 = sor.u32 %s235, %s236
      %p238 = scmp.eq.s32.totalorder %s237, 0
      %s240 = sadd.s32 %s239, 1
      %s241 = scalar_select %p238, %s239, %s240
      %p244 = pneg %p238
      %p245 = scmp.eq.s32.totalorder %s26, 1
      %p246 = por %p244, %p245
      %p247 = scmp.ne.s32.totalorder %s239, %s242
      %p248 = scmp.eq.s32.totalorder %s26, 0
      %p249 = por %p247, %p248
      %p250 = scmp.ne.s32.totalorder %s239, %s242
      %p251 = scmp.eq.s32.totalorder %s31, 1
      %p252 = por %p250, %p251
      %p253 = scmp.ne.s32.totalorder %s242, %s243
      %p254 = scmp.eq.s32.totalorder %s31, 0
      %p255 = por %p253, %p254
      %p256 = scmp.ne.s32.totalorder %s242, %s243
      %p257 = scmp.eq.s32.totalorder %s32, 1
      %p258 = por %p256, %p257
      %p260 = scmp.ne.s32.totalorder %s243, %s259
      %p261 = scmp.eq.s32.totalorder %s32, 0
      %p262 = por %p260, %p261
      %p263 = scmp.le.s32.totalorder 1, %s26
      %p264 = scmp.lt.s32.totalorder %s26, 3
      %p265 = pnand %p263, %p264
      %p266 = pneg %p265
      // Predicated region
      $region9: #{tpu_custom_call.1} parent=5 // pred_check
        _
      $region10: #{tpu_custom_call.1} parent=5 // pred_check_branch
        %268 = sbr.rel (%p265) target = $region12
      $region11: #{tpu_custom_call.1} parent=5 // pred_region
        %s269 = ssub.s32 %s26, 1
        // Predicated region
        $region13: #{tpu_custom_call.1} parent=11 // pred_check
          %p270 = pneg %p87
        $region14: #{tpu_custom_call.1} parent=11 // pred_check_branch
          %272 = sbr.rel (%p270) target = $region16
        $region15: #{tpu_custom_call.1} parent=11 // pred_region
          _
        $region16: #{tpu_custom_call.1} parent=11 // pred_fallthru
          _
        // Predicated region
        $region17: #{tpu_custom_call.1} parent=11 // pred_check
          %p273 = pneg %p108
        $region18: #{tpu_custom_call.1} parent=11 // pred_check_branch
          %275 = sbr.rel (%p273) target = $region20
        $region19: #{tpu_custom_call.1} parent=11 // pred_region
          _
        $region20: #{tpu_custom_call.1} parent=11 // pred_fallthru
          _
        // Predicated region
        $region21: #{tpu_custom_call.1} parent=11 // pred_check
          %p276 = pneg %p129
        $region22: #{tpu_custom_call.1} parent=11 // pred_check_branch
          %278 = sbr.rel (%p276) target = $region24
        $region23: #{tpu_custom_call.1} parent=11 // pred_region
          %s280 = ssub.s32 256, 256
          %281 = vsyncadd [#allocation6], %s280
          %s282 = sshll.u32 [#allocation5], 4
          %s283 = int_to_ptr.vmem [resolvable:$true] %s282
          %288 = dma.hbm_to_vmem [thread:$0]  %s3, 256, %s283, [#allocation6], 64, 64, 4
        $region24: #{tpu_custom_call.1} parent=11 // pred_fallthru
          _
        // Predicated region
        $region25: #{tpu_custom_call.1} parent=11 // pred_check
          %p289 = pneg %p150
        $region26: #{tpu_custom_call.1} parent=11 // pred_check_branch
          %291 = sbr.rel (%p289) target = $region28
        $region27: #{tpu_custom_call.1} parent=11 // pred_region
          %s293 = ssub.s32 256, 256
          %294 = vsyncadd [#allocation6], %s293
          %s295 = sshll.u32 [#allocation7], 4
          %s296 = int_to_ptr.vmem [resolvable:$true] %s295
          %301 = dma.hbm_to_vmem [thread:$0]  %s4, 256, %s296, [#allocation6], 64, 64, 4
        $region28: #{tpu_custom_call.1} parent=11 // pred_fallthru
          _
        // Predicated region
        $region29: #{tpu_custom_call.1} parent=11 // pred_check
          %p302 = pneg %p171
        $region30: #{tpu_custom_call.1} parent=11 // pred_check_branch
          %304 = sbr.rel (%p302) target = $region32
        $region31: #{tpu_custom_call.1} parent=11 // pred_region
          %s306 = ssub.s32 256, 256
          %307 = vsyncadd [#allocation9], %s306
          %s308 = sshll.u32 [#allocation8], 4
          %s309 = int_to_ptr.vmem [resolvable:$true] %s308
          %314 = dma.hbm_to_vmem [thread:$0]  %s5, 256, %s309, [#allocation9], 64, 64, 4
        $region32: #{tpu_custom_call.1} parent=11 // pred_fallthru
          _
      $region12: #{tpu_custom_call.1} parent=5 // pred_fallthru
        _
      %p315 = scmp.lt.s32.totalorder %s26, 2
      // Predicated region
      $region33: #{tpu_custom_call.1} parent=5 // pred_check
        %p316 = pneg %p315
      $region34: #{tpu_custom_call.1} parent=5 // pred_check_branch
        %318 = sbr.rel (%p316) target = $region36
      $region35: #{tpu_custom_call.1} parent=5 // pred_region
        // Predicated region
        $region37: #{tpu_custom_call.1} parent=35 // pred_check
          %p319 = pneg %p60
        $region38: #{tpu_custom_call.1} parent=35 // pred_check_branch
          %321 = sbr.rel (%p319) target = $region40
        $region39: #{tpu_custom_call.1} parent=35 // pred_region
          %s322 = sand.u32 %s50, 1
          %s323 = scalar_lea.sflag [#allocation3], %s322
          %s324 = sand.u32 %s50, 1
          %s325 = smul.addr %s324, 8
          %s326 = scalar_lea.vmem [#allocation2], %s325
          %s328 = ssub.s32 128, 128
          %329 = vsyncadd %s323, %s328
          %s330 = sadd.s32 %s34, %s33
          %s331 = smul.addr %s330, 128
          %s332 = scalar_lea.hbm %s0, %s331
          %s334 = sshll.u32 %s326, 4
          %s335 = int_to_ptr.vmem [resolvable:$true] %s334
          %337 = dma.hbm_to_vmem [thread:$0]  %s332, 128, %s335, %s323
        $region40: #{tpu_custom_call.1} parent=35 // pred_fallthru
          _
      $region36: #{tpu_custom_call.1} parent=5 // pred_fallthru
        _
      %p338 = scmp.le.s32.totalorder 1, %s26
      %p339 = scmp.lt.s32.totalorder %s26, 3
      %p340 = pnand %p338, %p339
      %p341 = pneg %p340
      // Predicated region
      $region41: #{tpu_custom_call.1} parent=5 // pred_check
        _
      $region42: #{tpu_custom_call.1} parent=5 // pred_check_branch
        %343 = sbr.rel (%p340) target = $region44
      $region43: #{tpu_custom_call.1} parent=5 // pred_region
        %s344 = ssub.s32 %s26, 1
        %s345 = sand.u32 %s53, 1
        %s346 = scalar_lea.sflag [#allocation3], %s345
        %s347 = sand.u32 %s53, 1
        %s348 = smul.addr %s347, 8
        %s349 = scalar_lea.vmem [#allocation2], %s348
        // Predicated region
        $region45: #{tpu_custom_call.1} parent=43 // pred_check
          %p350 = pneg %p66
        $region46: #{tpu_custom_call.1} parent=43 // pred_check_branch
          %352 = sbr.rel (%p350) target = $region48
        $region47: #{tpu_custom_call.1} parent=43 // pred_region
          %353 = dma.done %s346, 128
        $region48: #{tpu_custom_call.1} parent=43 // pred_fallthru
          _
        // Predicated region
        $region49: #{tpu_custom_call.1} parent=43 // pred_check
          %p354 = pneg %p129
        $region50: #{tpu_custom_call.1} parent=43 // pred_check_branch
          %356 = sbr.rel (%p354) target = $region52
        $region51: #{tpu_custom_call.1} parent=43 // pred_region
          %357 = dma.done [#allocation6], 256
        $region52: #{tpu_custom_call.1} parent=43 // pred_fallthru
          _
        // Predicated region
        $region53: #{tpu_custom_call.1} parent=43 // pred_check
          %p358 = pneg %p150
        $region54: #{tpu_custom_call.1} parent=43 // pred_check_branch
          %360 = sbr.rel (%p358) target = $region56
        $region55: #{tpu_custom_call.1} parent=43 // pred_region
          %361 = dma.done [#allocation6], 256
        $region56: #{tpu_custom_call.1} parent=43 // pred_fallthru
          _
        // Predicated region
        $region57: #{tpu_custom_call.1} parent=43 // pred_check
          %p362 = pneg %p171
        $region58: #{tpu_custom_call.1} parent=43 // pred_check_branch
          %364 = sbr.rel (%p362) target = $region60
        $region59: #{tpu_custom_call.1} parent=43 // pred_region
          %365 = dma.done [#allocation9], 256
        $region60: #{tpu_custom_call.1} parent=43 // pred_fallthru
          _
        %s366 = sand.u32 %s53, 1
        %s367 = scalar_lea.sflag [#allocation3], %s366
        %s368 = sand.u32 %s53, 1
        %s369 = smul.addr %s368, 8
        %s370 = scalar_lea.vmem [#allocation2], %s369
        %p371 = pneg %p66
        %p372 = pneg %p63
        %p373 = pneg %p87
        %p374 = pneg %p84
        %p375 = pneg %p108
        %p376 = pneg %p105
        %p377 = pneg %p129
        %p378 = pneg %p126
        %p379 = pneg %p150
        %p380 = pneg %p147
        %p381 = pneg %p171
        %p382 = pneg %p168
        %p383 = pneg %p199
        %p384 = pneg %p196
        %s385 = sand.u32 %s186, 1
        %s386 = scalar_lea.sflag [#allocation4], %s385
        %s387 = sand.u32 %s186, 1
        %s388 = smul.addr %s387, 4
        %s389 = scalar_lea.vmem [#allocation10], %s388
        %p390 = pneg %p227
        %p391 = pneg %p224
        %s392 = sand.u32 %s31, 1
        %s393 = scalar_lea.sflag [#allocation12], %s392
        %s394 = sand.u32 %s214, 1
        %s395 = smul.addr %s394, 4
        %s396 = scalar_lea.vmem [#allocation11], %s395
        %p397 = pneg %p255
        %p398 = pneg %p252
        %s399 = sand.u32 %s31, 1
        %s400 = scalar_lea.sflag [#allocation12], %s399
        %s401 = sand.u32 %s242, 1
        %s402 = smul.addr %s401, 4
        %s403 = scalar_lea.vmem [#allocation13], %s402
        %v405 = vld [vmem:[%s349] sm:$0xff]
        %v406 = vld [vmem:[%s1] sm:$0x1]
        %v407 = vld [vmem:[%s2] sm:$0x1]
        %vm408 = vcmask 261120
        %v409 = vsel %vm408, %v405, 0.0
        %410 = vadd.xlane.f32.xlu0 %v409
        %v411 = vpop.xlane.xlu0 %410
        %v412 = vrcp.pop 32.0
        %v413 = vmul.f32 %v411, %v412
        %v414 = vsub.f32 %v405, %v413
        %v415 = vmul.f32 %v414, %v414
        %v416 = vsel %vm408, %v415, 0.0
        %417 = vadd.xlane.f32.xlu0 %v416
        %v418 = vpop.xlane.xlu0 %417
        %v419 = vmul.f32 %v418, %v412
        %v420 = vadd.f32 %v419, 1e-05
        %v421 = vrsqrt.pop %v420
        %v422 = vmul.f32 %v414, %v421
        %v424 = vlaneseq
        %v425 = vshrl.u32 %v424, 7
        %v426 = vsub.s32 0, %v425
        %v427 = vrot.slane %v406, %v426
        %v429 = vmul.f32 %v422, %v427
        %v431 = vlaneseq
        %v432 = vshrl.u32 %v431, 7
        %v433 = vsub.s32 0, %v432
        %v434 = vrot.slane %v407, %v433
        %v436 = vadd.f32 %v429, %v434
        %v437 = vpack.c.bf16 %v436, %v436
        %v438 = vld [vmem:[#allocation5] sm:$0xf]
        %v439 = vld [vmem:[#allocation5 + $0x4] sm:$0xf]
        %v440 = vld [vmem:[#allocation5 + $0x8] sm:$0xf]
        %v441 = vld [vmem:[#allocation5 + $0xc] sm:$0xf]
        %v446 = vunpack.c.l.b16 %v438
        %v447 = vunpack.c.l.b16 %v439
        %v448 = vunpack.c.l.b16 %v440
        %v449 = vunpack.c.l.b16 %v441
        %v450 = vpack.c.b16 %v447, %v446
        %v451 = vpack.c.b16 %v449, %v448
        %v455 = vsel %vm408, %v437, 0
        %457 = vmatprep.subr.bf16.mxu0 0
        %458 = vmatpush1.bf16.msra.mxu0 0
        %459 = vmatprep.subr.bf16.mxu0 0
        %460 = vmatpush1.bf16.msra.mxu0 0
        %461 = vmatprep.subr.bf16.mxu0 0
        %462 = vmatpush1.bf16.msra.mxu0 0
        %463 = vmatprep.subr.bf16.mxu0 0
        %464 = vmatpush1.bf16.msra.mxu0 0
        %465 = vmatprep.subr.bf16.mxu0 0
        %466 = vmatpush1.bf16.msra.mxu0 0
        %467 = vmatprep.subr.bf16.mxu0 0
        %468 = vmatpush1.bf16.msra.mxu0 0
        %469 = vmatprep.subr.bf16.mxu0 0
        %470 = vmatpush1.bf16.msra.mxu0 %v451
        %471 = vmatprep.subr.bf16.mxu0 0
        %472 = vmatpush1.bf16.msra.mxu0 %v450
        %473 = vmatprep.subr.bf16.mxu0 0
        %474 = vmatpush2.bf16.msra.mxu0 0
        %475 = vmatprep.subr.bf16.mxu0 0
        %476 = vmatpush2.bf16.msra.mxu0 0
        %477 = vmatprep.subr.bf16.mxu0 0
        %478 = vmatpush2.bf16.msra.mxu0 0
        %479 = vmatprep.subr.bf16.mxu0 0
        %480 = vmatpush2.bf16.msra.mxu0 0
        %481 = vmatprep.subr.bf16.mxu0 0
        %482 = vmatpush2.bf16.msra.mxu0 0
        %483 = vmatprep.subr.bf16.mxu0 0
        %484 = vmatpush2.bf16.msra.mxu0 0
        %485 = vmatprep.subr.bf16.mxu0 0
        %486 = vmatpush2.bf16.msra.mxu0 0
        %487 = vmatprep.subr.bf16.mxu0 0
        %488 = vmatpush2.bf16.msra.mxu0 0
        %489 = vmatprep.mubr.bf16.mxu0 0
        %490 = vmatmul.mubr.bf16.gmra.mxu0 %v455
        %v491 = vpop.f32.mrf.mxu0
        %v492 = vadd.f32 0.0, %v491
        %v493 = vpop.f32.mrf.mxu0
        %v494 = vpop.f32.mrf.mxu0
        %v495 = vpop.f32.mrf.mxu0
        %496 = vdwg.mxu0
        %v497 = vmul.f32 %v492, 0.17677669
        %v498 = vpack.c.bf16 %v497, %v497
        %vm499 = vcmask 519168
        %500 = vst.msk [vmem:[%s389] sm:$0xf] %vm499, %v498
        %v501 = vld [vmem:[#allocation7] sm:$0xf]
        %v502 = vld [vmem:[#allocation7 + $0x4] sm:$0xf]
        %v503 = vld [vmem:[#allocation7 + $0x8] sm:$0xf]
        %v504 = vld [vmem:[#allocation7 + $0xc] sm:$0xf]
        %v509 = vunpack.c.l.b16 %v501
        %v510 = vunpack.c.l.b16 %v502
        %v511 = vunpack.c.l.b16 %v503
        %v512 = vunpack.c.l.b16 %v504
        %v513 = vpack.c.b16 %v510, %v509
        %v514 = vpack.c.b16 %v512, %v511
        %517 = vmatprep.subr.bf16.mxu0 0
        %518 = vmatpush1.bf16.msra.mxu0 0
        %519 = vmatprep.subr.bf16.mxu0 0
        %520 = vmatpush1.bf16.msra.mxu0 0
        %521 = vmatprep.subr.bf16.mxu0 0
        %522 = vmatpush1.bf16.msra.mxu0 0
        %523 = vmatprep.subr.bf16.mxu0 0
        %524 = vmatpush1.bf16.msra.mxu0 0
        %525 = vmatprep.subr.bf16.mxu0 0
        %526 = vmatpush1.bf16.msra.mxu0 0
        %527 = vmatprep.subr.bf16.mxu0 0
        %528 = vmatpush1.bf16.msra.mxu0 0
        %529 = vmatprep.subr.bf16.mxu0 0
        %530 = vmatpush1.bf16.msra.mxu0 %v514
        %531 = vmatprep.subr.bf16.mxu0 0
        %532 = vmatpush1.bf16.msra.mxu0 %v513
        %533 = vmatprep.subr.bf16.mxu0 0
        %534 = vmatpush2.bf16.msra.mxu0 0
        %535 = vmatprep.subr.bf16.mxu0 0
        %536 = vmatpush2.bf16.msra.mxu0 0
        %537 = vmatprep.subr.bf16.mxu0 0
        %538 = vmatpush2.bf16.msra.mxu0 0
        %539 = vmatprep.subr.bf16.mxu0 0
        %540 = vmatpush2.bf16.msra.mxu0 0
        %541 = vmatprep.subr.bf16.mxu0 0
        %542 = vmatpush2.bf16.msra.mxu0 0
        %543 = vmatprep.subr.bf16.mxu0 0
        %544 = vmatpush2.bf16.msra.mxu0 0
        %545 = vmatprep.subr.bf16.mxu0 0
        %546 = vmatpush2.bf16.msra.mxu0 0
        %547 = vmatprep.subr.bf16.mxu0 0
        %548 = vmatpush2.bf16.msra.mxu0 0
        %549 = vmatprep.mubr.bf16.mxu0 0
        %550 = vmatmul.mubr.bf16.gmra.mxu0 %v455
        %v551 = vpop.f32.mrf.mxu0
        %v552 = vadd.f32 0.0, %v551
        %v553 = vpop.f32.mrf.mxu0
        %v554 = vpop.f32.mrf.mxu0
        %v555 = vpop.f32.mrf.mxu0
        %556 = vdwg.mxu0
        %v557 = vpack.c.bf16 %v552, %v552
        %558 = vst.msk [vmem:[%s396] sm:$0xf] %vm499, %v557
        %v559 = vld [vmem:[#allocation8] sm:$0xf]
        %v560 = vld [vmem:[#allocation8 + $0x4] sm:$0xf]
        %v561 = vld [vmem:[#allocation8 + $0x8] sm:$0xf]
        %v562 = vld [vmem:[#allocation8 + $0xc] sm:$0xf]
        %v567 = vunpack.c.l.b16 %v559
        %v568 = vunpack.c.l.b16 %v560
        %v569 = vunpack.c.l.b16 %v561
        %v570 = vunpack.c.l.b16 %v562
        %v571 = vpack.c.b16 %v568, %v567
        %v572 = vpack.c.b16 %v570, %v569
        %575 = vmatprep.subr.bf16.mxu0 0
        %576 = vmatpush1.bf16.msra.mxu0 0
        %577 = vmatprep.subr.bf16.mxu0 0
        %578 = vmatpush1.bf16.msra.mxu0 0
        %579 = vmatprep.subr.bf16.mxu0 0
        %580 = vmatpush1.bf16.msra.mxu0 0
        %581 = vmatprep.subr.bf16.mxu0 0
        %582 = vmatpush1.bf16.msra.mxu0 0
        %583 = vmatprep.subr.bf16.mxu0 0
        %584 = vmatpush1.bf16.msra.mxu0 0
        %585 = vmatprep.subr.bf16.mxu0 0
        %586 = vmatpush1.bf16.msra.mxu0 0
        %587 = vmatprep.subr.bf16.mxu0 0
        %588 = vmatpush1.bf16.msra.mxu0 %v572
        %589 = vmatprep.subr.bf16.mxu0 0
        %590 = vmatpush1.bf16.msra.mxu0 %v571
        %591 = vmatprep.subr.bf16.mxu0 0
        %592 = vmatpush2.bf16.msra.mxu0 0
        %593 = vmatprep.subr.bf16.mxu0 0
        %594 = vmatpush2.bf16.msra.mxu0 0
        %595 = vmatprep.subr.bf16.mxu0 0
        %596 = vmatpush2.bf16.msra.mxu0 0
        %597 = vmatprep.subr.bf16.mxu0 0
        %598 = vmatpush2.bf16.msra.mxu0 0
        %599 = vmatprep.subr.bf16.mxu0 0
        %600 = vmatpush2.bf16.msra.mxu0 0
        %601 = vmatprep.subr.bf16.mxu0 0
        %602 = vmatpush2.bf16.msra.mxu0 0
        %603 = vmatprep.subr.bf16.mxu0 0
        %604 = vmatpush2.bf16.msra.mxu0 0
        %605 = vmatprep.subr.bf16.mxu0 0
        %606 = vmatpush2.bf16.msra.mxu0 0
        %607 = vmatprep.mubr.bf16.mxu0 0
        %608 = vmatmul.mubr.bf16.gmra.mxu0 %v455
        %v609 = vpop.f32.mrf.mxu0
        %v610 = vadd.f32 0.0, %v609
        %v611 = vpop.f32.mrf.mxu0
        %v612 = vpop.f32.mrf.mxu0
        %v613 = vpop.f32.mrf.mxu0
        %614 = vdwg.mxu0
        %v615 = vpack.c.bf16 %v610, %v610
        %616 = vst.msk [vmem:[%s403] sm:$0xf] %vm499, %v615
        %s617 = sand.u32 %s186, 1
        %s618 = scalar_lea.sflag [#allocation4], %s617
        %s619 = sand.u32 %s186, 1
        %s620 = smul.addr %s619, 4
        %s621 = scalar_lea.vmem [#allocation10], %s620
        %s622 = sand.u32 %s31, 1
        %s623 = scalar_lea.sflag [#allocation12], %s622
        %s624 = sand.u32 %s214, 1
        %s625 = smul.addr %s624, 4
        %s626 = scalar_lea.vmem [#allocation11], %s625
        %s627 = sand.u32 %s31, 1
        %s628 = scalar_lea.sflag [#allocation12], %s627
        %s629 = sand.u32 %s242, 1
        %s630 = smul.addr %s629, 4
        %s631 = scalar_lea.vmem [#allocation13], %s630
        // Predicated region
        $region61: #{tpu_custom_call.1} parent=43 // pred_check
          %p632 = pneg %p196
        $region62: #{tpu_custom_call.1} parent=43 // pred_check_branch
          %634 = sbr.rel (%p632) target = $region64
        $region63: #{tpu_custom_call.1} parent=43 // pred_region
          %s636 = ssub.s32 64, 64
          %637 = vsyncadd %s618, %s636
          %s638 = sadd.s32 %s36, %s35
          %s639 = smul.addr %s638, 64
          %s640 = scalar_lea.hbm %s6, %s639
          %s642 = sshll.u32 %s621, 4
          %s643 = int_to_ptr.vmem [resolvable:$true] %s642
          %645 = dma.vmem_to_hbm [thread:$0]  %s643, 64, %s640, %s618
        $region64: #{tpu_custom_call.1} parent=43 // pred_fallthru
          _
        // Predicated region
        $region65: #{tpu_custom_call.1} parent=43 // pred_check
          %p646 = pneg %p224
        $region66: #{tpu_custom_call.1} parent=43 // pred_check_branch
          %648 = sbr.rel (%p646) target = $region68
        $region67: #{tpu_custom_call.1} parent=43 // pred_region
          %s650 = ssub.s32 64, 64
          %651 = vsyncadd %s623, %s650
          %s652 = sadd.s32 %s36, %s35
          %s653 = smul.addr %s652, 64
          %s654 = scalar_lea.hbm %s7, %s653
          %s656 = sshll.u32 %s626, 4
          %s657 = int_to_ptr.vmem [resolvable:$true] %s656
          %659 = dma.vmem_to_hbm [thread:$0]  %s657, 64, %s654, %s623
        $region68: #{tpu_custom_call.1} parent=43 // pred_fallthru
          _
        // Predicated region
        $region69: #{tpu_custom_call.1} parent=43 // pred_check
          %p660 = pneg %p252
        $region70: #{tpu_custom_call.1} parent=43 // pred_check_branch
          %662 = sbr.rel (%p660) target = $region72
        $region71: #{tpu_custom_call.1} parent=43 // pred_region
          %s664 = ssub.s32 64, 64
          %665 = vsyncadd %s628, %s664
          %s666 = sadd.s32 %s36, %s35
          %s667 = smul.addr %s666, 64
          %s668 = scalar_lea.hbm %s8, %s667
          %s670 = sshll.u32 %s631, 4
          %s671 = int_to_ptr.vmem [resolvable:$true] %s670
          %673 = dma.vmem_to_hbm [thread:$0]  %s671, 64, %s668, %s628
        $region72: #{tpu_custom_call.1} parent=43 // pred_fallthru
          _
      $region44: #{tpu_custom_call.1} parent=5 // pred_fallthru
        _
      %p674 = scmp.le.s32.totalorder 2, %s26
      // Predicated region
      $region73: #{tpu_custom_call.1} parent=5 // pred_check
        %p675 = pneg %p674
      $region74: #{tpu_custom_call.1} parent=5 // pred_check_branch
        %677 = sbr.rel (%p675) target = $region76
      $region75: #{tpu_custom_call.1} parent=5 // pred_region
        %s678 = ssub.s32 %s26, 2
        // Predicated region
        $region77: #{tpu_custom_call.1} parent=75 // pred_check
          %p679 = pneg %p202
        $region78: #{tpu_custom_call.1} parent=75 // pred_check_branch
          %681 = sbr.rel (%p679) target = $region80
        $region79: #{tpu_custom_call.1} parent=75 // pred_region
          %s682 = sand.u32 %s187, 1
          %s683 = scalar_lea.sflag [#allocation4], %s682
          %s684 = sand.u32 %s187, 1
          %s685 = smul.addr %s684, 4
          %s686 = scalar_lea.vmem [#allocation10], %s685
          %687 = dma.done %s683, 64
        $region80: #{tpu_custom_call.1} parent=75 // pred_fallthru
          _
        // Predicated region
        $region81: #{tpu_custom_call.1} parent=75 // pred_check
          %p688 = pneg %p230
        $region82: #{tpu_custom_call.1} parent=75 // pred_check_branch
          %690 = sbr.rel (%p688) target = $region84
        $region83: #{tpu_custom_call.1} parent=75 // pred_region
          %s691 = sand.u32 %s32, 1
          %s692 = scalar_lea.sflag [#allocation12], %s691
          %s693 = sand.u32 %s215, 1
          %s694 = smul.addr %s693, 4
          %s695 = scalar_lea.vmem [#allocation11], %s694
          %696 = dma.done %s692, 64
        $region84: #{tpu_custom_call.1} parent=75 // pred_fallthru
          _
        // Predicated region
        $region85: #{tpu_custom_call.1} parent=75 // pred_check
          %p697 = pneg %p258
        $region86: #{tpu_custom_call.1} parent=75 // pred_check_branch
          %699 = sbr.rel (%p697) target = $region88
        $region87: #{tpu_custom_call.1} parent=75 // pred_region
          %s700 = sand.u32 %s32, 1
          %s701 = scalar_lea.sflag [#allocation12], %s700
          %s702 = sand.u32 %s243, 1
          %s703 = smul.addr %s702, 4
          %s704 = scalar_lea.vmem [#allocation13], %s703
          %705 = dma.done %s701, 64
        $region88: #{tpu_custom_call.1} parent=75 // pred_fallthru
          _
      $region76: #{tpu_custom_call.1} parent=5 // pred_fallthru
        _
    $region6: #{tpu_custom_call.1} parent=1 // loop_footer
      %s30 = sadd.s32 1, %s26
    $region7: #{tpu_custom_call.1} parent=1 // loop_footer_branch
      %25 = sbr.rel target = $region3
    $region8: #{tpu_custom_call.1} parent=1 // loop_exit
      _
    %706 = vsyncpa [#allocation3], 1
    %s707 = scalar_lea.sflag [#allocation3], 1
    %708 = vsyncpa %s707, 1
    %709 = vsyncpa [#allocation6], 1
    %710 = vsyncpa [#allocation9], 1
    %711 = vsyncpa [#allocation4], 1
    %s712 = scalar_lea.sflag [#allocation4], 1
    %713 = vsyncpa %s712, 1
    %714 = vsyncpa [#allocation12], 1
    %s715 = scalar_lea.sflag [#allocation12], 1
    %716 = vsyncpa %s715, 1

</llo_original>
